<compile_context>
chip_gen: v7x
topology: tpu7x:2x2x1
jax: 0.10.0
libtpu: 0.0.40
codegen_flags: <defaults>
</compile_context>

<pallas_src>
import jax
import jax.numpy as jnp
from jax.experimental import pallas as pl
from jax.experimental.pallas import tpu as pltpu
import numpy as np

LEAKY_ALPHA = 0.2            # LeakyReLU negative slope (module's `alpha`)
NEG_INF = -9e15              # the module's masking constant
VMEM_LIMIT_BYTES = 32 * 1024 * 1024   # explicit; fits v7x (64 MiB physical) with headroom


# --------------------------------------------------------------------------- #
# Kernel 1: projection.  Wh = h @ W (bf16 MXU, f32 acc), padded lane-dense,
# plus fused attention projections f12 = Wh @ [a1 | a2].
# --------------------------------------------------------------------------- #
def proj_kernel(h_ref, w_ref, a12_ref, wh_ref, f12_ref):
    wh = jnp.dot(h_ref[...].astype(jnp.bfloat16),
                 w_ref[...].astype(jnp.bfloat16),
                 preferred_element_type=jnp.float32)          # [ti, F_pad] f32
    wh_ref[...] = wh.astype(jnp.bfloat16)                      # bf16 resident copy
    # Fused projections: one MXU pass instead of two lane-width-1 matmuls.
    f12_ref[...] = jnp.dot(wh, a12_ref[...],
                           preferred_element_type=jnp.float32)  # [ti, 2] f32


# --------------------------------------------------------------------------- #
# Kernel 2: masked attention + online softmax + attn @ Wh + ELU.
# grid = (row tiles i  [parallel],  key tiles j  [arbitrary / reduction]).
# --------------------------------------------------------------------------- #
def attn_kernel(f1_ref, f2_ref, adj_ref, wh_ref, out_ref, m_sc, l_sc, acc_sc):
    j = pl.program_id(1)

    @pl.when(j == 0)
    def _init():
        m_sc[...] = jnp.full_like(m_sc[...], -jnp.inf)
        l_sc[...] = jnp.zeros_like(l_sc[...])
        acc_sc[...] = jnp.zeros_like(acc_sc[...])

    # e[i, j] = leakyrelu(f1[i] + f2[j]); fold leaky-relu and adjacency mask
    # into one select chain (no full-tile temporaries).
    raw = f1_ref[...] + f2_ref[...]                   # [ti,1] + [1,tj] -> [ti,tj]
    s = jnp.where(adj_ref[...] > 0,
                  jnp.where(raw > 0, raw, LEAKY_ALPHA * raw),
                  NEG_INF)

    # Online (flash-style) softmax update across key tiles j.
    m_prev = m_sc[...]
    m_new = jnp.maximum(m_prev, jnp.max(s, axis=1, keepdims=True))
    scale = jnp.exp(m_prev - m_new)
    p = jnp.exp(s - m_new)                            # f32 softmax math
    l_sc[...] = scale * l_sc[...] + jnp.sum(p, axis=1, keepdims=True)
    acc_sc[...] = scale * acc_sc[...] + jnp.dot(
        p.astype(jnp.bfloat16), wh_ref[...], preferred_element_type=jnp.float32)
    m_sc[...] = m_new

    @pl.when(j == pl.num_programs(1) - 1)
    def _finalize():
        h_prime = acc_sc[...] * pl.reciprocal(l_sc[...], approx=True)
        # ELU(alpha=1). Clamp the dead branch so exp never sees large positives.
        out_ref[...] = jnp.where(h_prime > 0, h_prime,
                                 jnp.exp(jnp.minimum(h_prime, 0.0)) - 1.0)


# --------------------------------------------------------------------------- #
# Wrapper
# --------------------------------------------------------------------------- #
def gat_forward(h, W, a, adj, *, tile_i=128, tile_j=128):
    """h: [N, F_in] f32, W: [F_in, F_out] f32, a: [2*F_out, 1] f32, adj: [N, N]."""
    N, f_in = h.shape
    f_out = W.shape[1]
    f_pad = pl.cdiv(f_out, 128) * 128           # lane-dense output width

    tile_i = min(tile_i, N)
    tile_j = min(tile_j, N)
    assert N % tile_i == 0 and N % tile_j == 0, "N must be divisible by the tile sizes"

    # Pad W / a along F_out to the lane-dense width (zero columns/rows are inert).
    W_pad = jnp.zeros((f_in, f_pad), jnp.float32).at[:, :f_out].set(W)
    a12 = (jnp.zeros((f_pad, 2), jnp.float32)
           .at[:f_out, 0].set(a[:f_out, 0])
           .at[:f_out, 1].set(a[f_out:, 0]))
    # adj only feeds a `> 0` compare: stream it as int8 (4x fewer HBM bytes).
    adj_i8 = (adj > 0).astype(jnp.int8)

    # ---- Kernel 1: projections (row-tiled, parallel) ------------------------
    wh_bf16, f12 = pl.pallas_call(
        proj_kernel,
        grid=(N // tile_i,),
        in_specs=[
            pl.BlockSpec((tile_i, f_in), lambda i: (i, 0)),
            pl.BlockSpec((f_in, f_pad), lambda i: (0, 0)),
            pl.BlockSpec((f_pad, 2), lambda i: (0, 0)),
        ],
        out_specs=[
            pl.BlockSpec((tile_i, f_pad), lambda i: (i, 0)),
            pl.BlockSpec((tile_i, 2), lambda i: (i, 0)),
        ],
        out_shape=(
            jax.ShapeDtypeStruct((N, f_pad), jnp.bfloat16),
            jax.ShapeDtypeStruct((N, 2), jnp.float32),
        ),
        compiler_params=pltpu.CompilerParams(
            dimension_semantics=("parallel",),
            vmem_limit_bytes=VMEM_LIMIT_BYTES),
    )(h, W_pad, a12)

    # Layout plumbing done once, outside the hot j-loop:
    # f1 stays column-major [N, 1]; f2 goes lane-major [1, N] so the attention
    # kernel never transposes.
    f1 = f12[:, 0:1]
    f2_row = jnp.transpose(f12[:, 1:2])

    # ---- Kernel 2: tiled attention with online softmax ----------------------
    out_pad = pl.pallas_call(
        attn_kernel,
        grid=(N // tile_i, N // tile_j),
        in_specs=[
            pl.BlockSpec((tile_i, 1), lambda i, j: (i, 0)),        # f1 (queries)
            pl.BlockSpec((1, tile_j), lambda i, j: (0, j)),        # f2 (keys, lane-major)
            pl.BlockSpec((tile_i, tile_j), lambda i, j: (i, j)),   # adj tile (int8)
            pl.BlockSpec((tile_j, f_pad), lambda i, j: (j, 0)),    # Wh key tile (bf16)
        ],
        out_specs=pl.BlockSpec((tile_i, f_pad), lambda i, j: (i, 0)),  # resident acc
        out_shape=jax.ShapeDtypeStruct((N, f_pad), jnp.float32),
        scratch_shapes=[
            pltpu.VMEM((tile_i, 1), jnp.float32),       # running max
            pltpu.VMEM((tile_i, 1), jnp.float32),       # running sum
            pltpu.VMEM((tile_i, f_pad), jnp.float32),   # output accumulator
        ],
        compiler_params=pltpu.CompilerParams(
            dimension_semantics=("parallel", "arbitrary"),
            vmem_limit_bytes=VMEM_LIMIT_BYTES),
    )(f1, f2_row, adj_i8, wh_bf16)

    return out_pad[:, :f_out]


# --------------------------------------------------------------------------- #
# Pure-JAX reference mirroring the PyTorch module (inference mode, f32).
# --------------------------------------------------------------------------- #
def gat_reference(h, W, a, adj):
    f_out = W.shape[1]
    wh = h @ W
    f1 = wh @ a[:f_out, :]
    f2 = wh @ a[f_out:, :]
    e = f1 + f2.T
    e = jnp.where(e > 0, e, LEAKY_ALPHA * e)
    attention = jnp.where(adj > 0, e, NEG_INF)
    attention = jax.nn.softmax(attention, axis=1)
    h_prime = attention @ wh
    return jnp.where(h_prime > 0, h_prime, jnp.expm1(h_prime))


def xavier_uniform(key, shape, gain):
    fan_in, fan_out = shape[0], shape[1]
    bound = gain * np.sqrt(6.0 / (fan_in + fan_out))
    return jax.random.uniform(key, shape, jnp.float32, -bound, bound)


if __name__ == "__main__":
    N, F_IN, F_OUT = 256, 64, 32

    key = jax.random.PRNGKey(0)
    k_w, k_a, k_h, k_adj = jax.random.split(key, 4)

    # Deterministic parameter init matching the module's __init__ shapes.
    W = xavier_uniform(k_w, (F_IN, F_OUT), gain=1.414)
    a = xavier_uniform(k_a, (2 * F_OUT, 1), gain=1.414)

    # Example inputs.
    h = jax.random.normal(k_h, (N, F_IN), jnp.float32)
    adj = (jax.random.uniform(k_adj, (N, N)) > 0.5).astype(jnp.float32)
    adj = jnp.maximum(adj, jnp.eye(N, dtype=jnp.float32))  # self-loops

    out = jax.block_until_ready(gat_forward(h, W, a, adj))

    ref = gat_reference(h, W, a, adj)
    # Kernel uses bf16 MXU operands (per perf review) + approx reciprocal;
    # compare against the f32 reference with a correspondingly relaxed tolerance.
    np.testing.assert_allclose(np.asarray(out), np.asarray(ref), rtol=5e-2, atol=5e-2)

    print("KERNEL_OK")
</pallas_src>

<mosaic_0001>
module attributes {stable_mosaic.version = 11 : i64} {
  func.func @proj_kernel(%arg0: i32, %arg1: memref<128x64xf32, #tpu.memory_space<vmem>>, %arg2: memref<64x128xf32, #tpu.memory_space<vmem>>, %arg3: memref<128x2xf32, #tpu.memory_space<vmem>>, %arg4: memref<128x128xbf16, #tpu.memory_space<vmem>>, %arg5: memref<128x2xf32, #tpu.memory_space<vmem>>) attributes {dimension_semantics = [#tpu.dimension_semantics<parallel>], iteration_bounds = array<i64: 2>, scalar_prefetch = 0 : i64, scratch_operands = 0 : i64, tpu.core_type = #tpu.core_type<tc>, window_params = [{transform_indices = @transform_0, window_bounds = array<i64: 128, 64>}, {pipeline_mode = #tpu.pipeline_mode<synchronous>, transform_indices = @transform_1, window_bounds = array<i64: 64, 128>}, {pipeline_mode = #tpu.pipeline_mode<synchronous>, transform_indices = @transform_2, window_bounds = array<i64: 128, 2>}, {transform_indices = @transform_3, window_bounds = array<i64: 128, 128>}, {transform_indices = @transform_4, window_bounds = array<i64: 128, 2>}]} {
    %c0 = arith.constant 0 : index
    %c0_0 = arith.constant 0 : index
    %0 = vector.load %arg1[%c0, %c0_0] : memref<128x64xf32, #tpu.memory_space<vmem>>, vector<128x64xf32>
    %1 = arith.truncf %0 : vector<128x64xf32> to vector<128x64xbf16>
    %c0_1 = arith.constant 0 : index
    %c0_2 = arith.constant 0 : index
    %2 = vector.load %arg2[%c0_1, %c0_2] : memref<64x128xf32, #tpu.memory_space<vmem>>, vector<64x128xf32>
    %3 = arith.truncf %2 : vector<64x128xf32> to vector<64x128xbf16>
    %cst = arith.constant dense<0.000000e+00> : vector<128x128xf32>
    %4 = tpu.matmul %1, %3, %cst {dimension_numbers = #tpu.dot_dimension_numbers<[1], [0], [0], [1], [0, 0, 1, 1], [], []>} : vector<128x64xbf16>, vector<64x128xbf16>, vector<128x128xf32> -> vector<128x128xf32>
    %5 = arith.truncf %4 : vector<128x128xf32> to vector<128x128xbf16>
    %c0_3 = arith.constant 0 : index
    %c0_4 = arith.constant 0 : index
    %6 = vector.load %arg4[%c0_3, %c0_4] : memref<128x128xbf16, #tpu.memory_space<vmem>>, vector<128x128xbf16>
    tpu.vector_store %arg4[%c0_3, %c0_4], %5 {strides = array<i32>} : memref<128x128xbf16, #tpu.memory_space<vmem>>, vector<128x128xbf16>,
    %c0_5 = arith.constant 0 : index
    %c0_6 = arith.constant 0 : index
    %7 = vector.load %arg3[%c0_5, %c0_6] : memref<128x2xf32, #tpu.memory_space<vmem>>, vector<128x2xf32>
    %cst_7 = arith.constant dense<0.000000e+00> : vector<128x2xf32>
    %8 = tpu.matmul %4, %7, %cst_7 {dimension_numbers = #tpu.dot_dimension_numbers<[1], [0], [0], [1], [0, 0, 1, 1], [], []>} : vector<128x128xf32>, vector<128x2xf32>, vector<128x2xf32> -> vector<128x2xf32>
    %c0_8 = arith.constant 0 : index
    %c0_9 = arith.constant 0 : index
    %9 = vector.load %arg5[%c0_8, %c0_9] : memref<128x2xf32, #tpu.memory_space<vmem>>, vector<128x2xf32>
    tpu.vector_store %arg5[%c0_8, %c0_9], %8 {strides = array<i32>} : memref<128x2xf32, #tpu.memory_space<vmem>>, vector<128x2xf32>,
    return
  }
  func.func @transform_0(%arg0: i32) -> (i32, i32) {
    %c0_i32 = arith.constant 0 : i32
    %c0_i32_0 = arith.constant 0 : i32
    return %arg0, %c0_i32 : i32, i32
  }
  func.func @transform_1(%arg0: i32) -> (i32, i32) {
    %c0_i32 = arith.constant 0 : i32
    %c0_i32_0 = arith.constant 0 : i32
    %c0_i32_1 = arith.constant 0 : i32
    return %c0_i32, %c0_i32_0 : i32, i32
  }
  func.func @transform_2(%arg0: i32) -> (i32, i32) {
    %c0_i32 = arith.constant 0 : i32
    %c0_i32_0 = arith.constant 0 : i32
    %c0_i32_1 = arith.constant 0 : i32
    return %c0_i32, %c0_i32_0 : i32, i32
  }
  func.func @transform_3(%arg0: i32) -> (i32, i32) {
    %c0_i32 = arith.constant 0 : i32
    %c0_i32_0 = arith.constant 0 : i32
    return %arg0, %c0_i32 : i32, i32
  }
  func.func @transform_4(%arg0: i32) -> (i32, i32) {
    %c0_i32 = arith.constant 0 : i32
    %c0_i32_0 = arith.constant 0 : i32
    return %arg0, %c0_i32 : i32, i32
  }
}

</mosaic_0001>

<llo_original>
// kernel: tpu_custom_call.1
$region0: #{tpu_custom_call.1}
  #allocation0 [shape = 'u32[]', space=smem, size = 0x4, offset = 0x4, fixed_abs, tag = 'smem constant byte address 0x4 - core index']
  #allocation1 [shape = 'u32[144,128]{1,0:T(1,128)}', space=vmem, size = 0x12000, scoped, tag = 'internal scratch']
  %s0 = inlined_call_operand.vmem [shape: f32[256,64], index: 0, kind: input, shape index: {}]
  %s1 = inlined_call_operand.vmem [shape: f32[64,128], index: 1, kind: input, shape index: {}]
  %s2 = inlined_call_operand.vmem [shape: f32[128,2], index: 2, kind: input, shape index: {}]
  %s3 = inlined_call_operand.hbm [shape: bf16[256,128], index: 3, kind: output, shape index: {0}]
  %s4 = inlined_call_operand.vmem [shape: f32[256,2], index: 4, kind: output, shape index: {1}]
  %5 = xla_tuple %s3, %s4
  %s6 = sld [smem:[#allocation0]]
  $region53: #{tpu_custom_call.1} parent=0
    _
  %s8 = ssub.s32 1, %s6
  %s9 = scalar_select 0, %s8, %s6
  $region1: #{tpu_custom_call.1} parent=0
    #allocation2 [shape = 'u8[65536]{0}', space=vmem, size = 0x10000, scoped, tag = 'output window, operand 0']
    #allocation3 [shape = 's32[2]{0}', space=sflag, size = 0x8, scoped, tag = 'scoped memory for tpu_custom_call.1']
    %10 = vsyncpa [#allocation3], 0
    %s11 = scalar_lea.sflag [#allocation3], 1
    %12 = vsyncpa %s11, 0
    loop: start=0, step=1, limit=4
    $region2: #{tpu_custom_call.1} parent=1 // loop_pre_header
      _
    $region3: #{tpu_custom_call.1} parent=1 // loop_header
      %s14 = sphi 0, %s18
      %p15 = scmp.ge.s32.totalorder %s14, 4
      %s24 = sphi 0, %s26
      %s27 = sphi 0, %s24
      %s28 = sphi 0, %s27
      %s44 = sphi 0, %s28
      %s48 = sphi 0, %s48
      %s50 = sphi 0, %s48
      %s51 = sphi 0, %s50
      %s65 = sphi 0, %s51
      %s69 = sphi 0, %s69
      %s71 = sphi 0, %s69
      %s72 = sphi 0, %s71
      %s86 = sphi 0, %s72
      %s92 = sphi 0, %s94
      %s95 = sphi 0, %s92
      %s96 = sphi 0, %s95
      %s112 = sphi 0, %s96
      %s118 = sphi 0, %s120
      %s121 = sphi 0, %s118
      %s122 = sphi 0, %s121
      %s138 = sphi 0, %s122
    $region4: #{tpu_custom_call.1} parent=1 // loop_header_branch
      %17 = sbr.rel (%p15) target = $region8
    $region5: #{tpu_custom_call.1} parent=1 // loop_body
      %s19 = ssub.s32 %s14, 1
      %s20 = ssub.s32 %s14, 2
      %s21 = sadd.s32 %s14, 1
      %s22 = ssub.s32 %s14, %s21
      %p23 = scmp.eq.s32.totalorder %s22, 0
      %s25 = sadd.s32 %s24, 1
      %s26 = scalar_select %p23, %s24, %s25
      %p29 = pneg %p23
      %p30 = scmp.eq.s32.totalorder %s14, 1
      %p31 = por %p29, %p30
      %p32 = scmp.ne.s32.totalorder %s24, %s27
      %p33 = scmp.eq.s32.totalorder %s14, 0
      %p34 = por %p32, %p33
      %p35 = scmp.ne.s32.totalorder %s24, %s27
      %p36 = scmp.eq.s32.totalorder %s19, 1
      %p37 = por %p35, %p36
      %p38 = scmp.ne.s32.totalorder %s27, %s28
      %p39 = scmp.eq.s32.totalorder %s19, 0
      %p40 = por %p38, %p39
      %p41 = scmp.ne.s32.totalorder %s27, %s28
      %p42 = scmp.eq.s32.totalorder %s20, 1
      %p43 = por %p41, %p42
      %p45 = scmp.ne.s32.totalorder %s28, %s44
      %p46 = scmp.eq.s32.totalorder %s20, 0
      %p47 = por %p45, %p46
      %s49 = sadd.s32 %s48, 1
      %p52 = scmp.eq.s32.totalorder %s14, 1
      %p53 = scmp.ne.s32.totalorder %s48, %s50
      %p54 = scmp.eq.s32.totalorder %s14, 0
      %p55 = por %p53, %p54
      %p56 = scmp.ne.s32.totalorder %s48, %s50
      %p57 = scmp.eq.s32.totalorder %s19, 1
      %p58 = por %p56, %p57
      %p59 = scmp.ne.s32.totalorder %s50, %s51
      %p60 = scmp.eq.s32.totalorder %s19, 0
      %p61 = por %p59, %p60
      %p62 = scmp.ne.s32.totalorder %s50, %s51
      %p63 = scmp.eq.s32.totalorder %s20, 1
      %p64 = por %p62, %p63
      %p66 = scmp.ne.s32.totalorder %s51, %s65
      %p67 = scmp.eq.s32.totalorder %s20, 0
      %p68 = por %p66, %p67
      %s70 = sadd.s32 %s69, 1
      %p73 = scmp.eq.s32.totalorder %s14, 1
      %p74 = scmp.ne.s32.totalorder %s69, %s71
      %p75 = scmp.eq.s32.totalorder %s14, 0
      %p76 = por %p74, %p75
      %p77 = scmp.ne.s32.totalorder %s69, %s71
      %p78 = scmp.eq.s32.totalorder %s19, 1
      %p79 = por %p77, %p78
      %p80 = scmp.ne.s32.totalorder %s71, %s72
      %p81 = scmp.eq.s32.totalorder %s19, 0
      %p82 = por %p80, %p81
      %p83 = scmp.ne.s32.totalorder %s71, %s72
      %p84 = scmp.eq.s32.totalorder %s20, 1
      %p85 = por %p83, %p84
      %p87 = scmp.ne.s32.totalorder %s72, %s86
      %p88 = scmp.eq.s32.totalorder %s20, 0
      %p89 = por %p87, %p88
      %s90 = ssub.s32 %s14, %s21
      %p91 = scmp.eq.s32.totalorder %s90, 0
      %s93 = sadd.s32 %s92, 1
      %s94 = scalar_select %p91, %s92, %s93
      %p97 = pneg %p91
      %p98 = scmp.eq.s32.totalorder %s14, 1
      %p99 = por %p97, %p98
      %p100 = scmp.ne.s32.totalorder %s92, %s95
      %p101 = scmp.eq.s32.totalorder %s14, 0
      %p102 = por %p100, %p101
      %p103 = scmp.ne.s32.totalorder %s92, %s95
      %p104 = scmp.eq.s32.totalorder %s19, 1
      %p105 = por %p103, %p104
      %p106 = scmp.ne.s32.totalorder %s95, %s96
      %p107 = scmp.eq.s32.totalorder %s19, 0
      %p108 = por %p106, %p107
      %p109 = scmp.ne.s32.totalorder %s95, %s96
      %p110 = scmp.eq.s32.totalorder %s20, 1
      %p111 = por %p109, %p110
      %p113 = scmp.ne.s32.totalorder %s96, %s112
      %p114 = scmp.eq.s32.totalorder %s20, 0
      %p115 = por %p113, %p114
      %s116 = ssub.s32 %s14, %s21
      %p117 = scmp.eq.s32.totalorder %s116, 0
      %s119 = sadd.s32 %s118, 1
      %s120 = scalar_select %p117, %s118, %s119
      %p123 = pneg %p117
      %p124 = scmp.eq.s32.totalorder %s14, 1
      %p125 = por %p123, %p124
      %p126 = scmp.ne.s32.totalorder %s118, %s121
      %p127 = scmp.eq.s32.totalorder %s14, 0
      %p128 = por %p126, %p127
      %p129 = scmp.ne.s32.totalorder %s118, %s121
      %p130 = scmp.eq.s32.totalorder %s19, 1
      %p131 = por %p129, %p130
      %p132 = scmp.ne.s32.totalorder %s121, %s122
      %p133 = scmp.eq.s32.totalorder %s19, 0
      %p134 = por %p132, %p133
      %p135 = scmp.ne.s32.totalorder %s121, %s122
      %p136 = scmp.eq.s32.totalorder %s20, 1
      %p137 = por %p135, %p136
      %p139 = scmp.ne.s32.totalorder %s122, %s138
      %p140 = scmp.eq.s32.totalorder %s20, 0
      %p141 = por %p139, %p140
      %p142 = scmp.le.s32.totalorder 1, %s14
      %p143 = scmp.lt.s32.totalorder %s14, 3
      %p144 = pnand %p142, %p143
      %p145 = pneg %p144
      // Predicated region
      $region9: #{tpu_custom_call.1} parent=5 // pred_check
        _
      $region10: #{tpu_custom_call.1} parent=5 // pred_check_branch
        %147 = sbr.rel (%p144) target = $region12
      $region11: #{tpu_custom_call.1} parent=5 // pred_region
        %s148 = ssub.s32 %s14, 1
        // Predicated region
        $region13: #{tpu_custom_call.1} parent=11 // pred_check
          %p149 = pneg %p61
        $region14: #{tpu_custom_call.1} parent=11 // pred_check_branch
          %151 = sbr.rel (%p149) target = $region16
        $region15: #{tpu_custom_call.1} parent=11 // pred_region
          _
        $region16: #{tpu_custom_call.1} parent=11 // pred_fallthru
          _
        // Predicated region
        $region17: #{tpu_custom_call.1} parent=11 // pred_check
          %p152 = pneg %p82
        $region18: #{tpu_custom_call.1} parent=11 // pred_check_branch
          %154 = sbr.rel (%p152) target = $region20
        $region19: #{tpu_custom_call.1} parent=11 // pred_region
          _
        $region20: #{tpu_custom_call.1} parent=11 // pred_fallthru
          _
      $region12: #{tpu_custom_call.1} parent=5 // pred_fallthru
        _
      %p155 = scmp.lt.s32.totalorder %s14, 2
      // Predicated region
      $region21: #{tpu_custom_call.1} parent=5 // pred_check
        %p156 = pneg %p155
      $region22: #{tpu_custom_call.1} parent=5 // pred_check_branch
        %158 = sbr.rel (%p156) target = $region24
      $region23: #{tpu_custom_call.1} parent=5 // pred_region
        // Predicated region
        $region25: #{tpu_custom_call.1} parent=23 // pred_check
          %p159 = pneg %p34
        $region26: #{tpu_custom_call.1} parent=23 // pred_check_branch
          %161 = sbr.rel (%p159) target = $region28
        $region27: #{tpu_custom_call.1} parent=23 // pred_region
          %s162 = smul.u32 16, %s14
          %p163 = scmp.lt.s32.totalorder %s162, 31
          %s164 = scalar_select %p163, %s162, 31
          %s165 = smul.addr %s164, 8
          %s166 = scalar_lea.vmem %s0, %s165
          %s167 = smul.u32 16, %s14
        $region28: #{tpu_custom_call.1} parent=23 // pred_fallthru
          _
      $region24: #{tpu_custom_call.1} parent=5 // pred_fallthru
        _
      %p168 = scmp.le.s32.totalorder 1, %s14
      %p169 = scmp.lt.s32.totalorder %s14, 3
      %p170 = pnand %p168, %p169
      %p171 = pneg %p170
      // Predicated region
      $region29: #{tpu_custom_call.1} parent=5 // pred_check
        _
      $region30: #{tpu_custom_call.1} parent=5 // pred_check_branch
        %173 = sbr.rel (%p170) target = $region32
      $region31: #{tpu_custom_call.1} parent=5 // pred_region
        %s174 = ssub.s32 %s14, 1
        %s175 = smul.u32 16, %s19
        %p176 = scmp.lt.s32.totalorder %s175, 31
        %s177 = scalar_select %p176, %s175, 31
        %s178 = smul.addr %s177, 8
        %s179 = scalar_lea.vmem %s0, %s178
        %p180 = pneg %p40
        %p181 = pneg %p37
        %p182 = pneg %p61
        %p183 = pneg %p58
        %p184 = pneg %p82
        %p185 = pneg %p79
        %p186 = pneg %p108
        %p187 = pneg %p105
        %s188 = sand.u32 %s95, 1
        %s189 = scalar_lea.sflag [#allocation3], %s188
        %s190 = sand.u32 %s95, 1
        %s191 = smul.addr %s190, 64
        %s192 = scalar_lea.vmem [#allocation2], %s191
        %p193 = pneg %p134
        %p194 = pneg %p131
        %s195 = smul.u32 16, %s19
        %p196 = scmp.lt.s32.totalorder %s195, 31
        %s197 = scalar_select %p196, %s195, 31
        %s198 = smul.addr %s197, 8
        %s199 = scalar_lea.vmem %s4, %s198
        %s200 = smul.u32 16, %s19
        %p201 = scmp.lt.s32.totalorder %s200, 31
        %s202 = scalar_select %p201, %s200, 31
        %s203 = smul.addr %s202, 8
        %s204 = scalar_lea.vmem %s0, %s203
        %s205 = smul.u32 16, %s19
        %s206 = smul.u32 16, %s19
        %s207 = smul.u32 16, %s19
        %p208 = scmp.lt.s32.totalorder %s207, 31
        %s209 = scalar_select %p208, %s207, 31
        %s210 = smul.addr %s209, 8
        %s211 = scalar_lea.vmem %s4, %s210
        %s212 = smul.u32 16, %s19
        %v214 = vld [vmem:[%s204] sm:$0xff]
        %v215 = vld [vmem:[%s204 + $0x8] sm:$0xff]
        %v216 = vld [vmem:[%s204 + $0x10] sm:$0xff]
        %v217 = vld [vmem:[%s204 + $0x18] sm:$0xff]
        %v218 = vld [vmem:[%s204 + $0x20] sm:$0xff]
        %v219 = vld [vmem:[%s204 + $0x28] sm:$0xff]
        %v220 = vld [vmem:[%s204 + $0x30] sm:$0xff]
        %v221 = vld [vmem:[%s204 + $0x38] sm:$0xff]
        %v222 = vld [vmem:[%s204 + $0x40] sm:$0xff]
        %v223 = vld [vmem:[%s204 + $0x48] sm:$0xff]
        %v224 = vld [vmem:[%s204 + $0x50] sm:$0xff]
        %v225 = vld [vmem:[%s204 + $0x58] sm:$0xff]
        %v226 = vld [vmem:[%s204 + $0x60] sm:$0xff]
        %v227 = vld [vmem:[%s204 + $0x68] sm:$0xff]
        %v228 = vld [vmem:[%s204 + $0x70] sm:$0xff]
        %v229 = vld [vmem:[%s204 + $0x78] sm:$0xff]
        %v230 = vpack.c.bf16 %v215, %v214
        %v231 = vpack.c.bf16 %v217, %v216
        %v232 = vpack.c.bf16 %v219, %v218
        %v233 = vpack.c.bf16 %v221, %v220
        %v234 = vpack.c.bf16 %v223, %v222
        %v235 = vpack.c.bf16 %v225, %v224
        %v236 = vpack.c.bf16 %v227, %v226
        %v237 = vpack.c.bf16 %v229, %v228
        %v238 = vld [vmem:[%s1] sm:$0xff]
        %v239 = vld [vmem:[%s1 + $0x8] sm:$0xff]
        %v240 = vld [vmem:[%s1 + $0x10] sm:$0xff]
        %v241 = vld [vmem:[%s1 + $0x18] sm:$0xff]
        %v242 = vld [vmem:[%s1 + $0x20] sm:$0xff]
        %v243 = vld [vmem:[%s1 + $0x28] sm:$0xff]
        %v244 = vld [vmem:[%s1 + $0x30] sm:$0xff]
        %v245 = vld [vmem:[%s1 + $0x38] sm:$0xff]
        %v246 = vpack.c.bf16 %v239, %v238
        %v247 = vpack.c.bf16 %v241, %v240
        %v248 = vpack.c.bf16 %v243, %v242
        %v249 = vpack.c.bf16 %v245, %v244
        %vm250 = vcmask 523264
        %v252 = vsel %vm250, %v230, 0
        %v255 = vsel %vm250, %v231, 0
        %v258 = vsel %vm250, %v232, 0
        %v261 = vsel %vm250, %v233, 0
        %v264 = vsel %vm250, %v234, 0
        %v267 = vsel %vm250, %v235, 0
        %v270 = vsel %vm250, %v236, 0
        %v273 = vsel %vm250, %v237, 0
        %275 = vmatprep.subr.bf16.mxu0 0
        %276 = vmatpush1.bf16.msra.mxu0 %v246
        %277 = vmatprep.subr.bf16.mxu0 0
        %278 = vmatpush1.bf16.msra.mxu0 %v247
        %279 = vmatprep.subr.bf16.mxu0 0
        %280 = vmatpush1.bf16.msra.mxu0 %v248
        %281 = vmatprep.subr.bf16.mxu0 0
        %282 = vmatpush1.bf16.msra.mxu0 %v249
        %283 = vmatprep.subr.bf16.mxu0 0
        %284 = vmatpush1.bf16.msra.mxu0 0
        %285 = vmatprep.subr.bf16.mxu0 0
        %286 = vmatpush1.bf16.msra.mxu0 0
        %287 = vmatprep.subr.bf16.mxu0 0
        %288 = vmatpush1.bf16.msra.mxu0 0
        %289 = vmatprep.subr.bf16.mxu0 0
        %290 = vmatpush1.bf16.msra.mxu0 0
        %291 = vmatprep.subr.bf16.mxu0 0
        %292 = vmatpush1.bf16.msra.mxu0 0
        %293 = vmatprep.subr.bf16.mxu0 0
        %294 = vmatpush1.bf16.msra.mxu0 0
        %295 = vmatprep.subr.bf16.mxu0 0
        %296 = vmatpush1.bf16.msra.mxu0 0
        %297 = vmatprep.subr.bf16.mxu0 0
        %298 = vmatpush1.bf16.msra.mxu0 0
        %299 = vmatprep.subr.bf16.mxu0 0
        %300 = vmatpush1.bf16.msra.mxu0 0
        %301 = vmatprep.subr.bf16.mxu0 0
        %302 = vmatpush1.bf16.msra.mxu0 0
        %303 = vmatprep.subr.bf16.mxu0 0
        %304 = vmatpush1.bf16.msra.mxu0 0
        %305 = vmatprep.subr.bf16.mxu0 0
        %306 = vmatpush1.bf16.msra.mxu0 0
        %307 = vmatprep.mubr.bf16.mxu0 0
        %308 = vmatmul.mubr.bf16.gmra.mrb[0].mxu0 %v252
        %v309 = vpop.f32.mrb[0].mxu0
        %v310 = vadd.f32 0.0, %v309
        %v311 = vpop.f32.mrb[0].mxu0
        %v312 = vpop.f32.mrb[0].mxu0
        %v313 = vadd.f32 0.0, %v312
        %v314 = vpop.f32.mrb[0].mxu0
        %315 = vmatprep.mubr.bf16.mxu0 0
        %316 = vmatmul.mubr.bf16.gmra.mrb[0].mxu0 %v255
        %v317 = vpop.f32.mrb[0].mxu0
        %v318 = vadd.f32 0.0, %v317
        %v319 = vpop.f32.mrb[0].mxu0
        %v320 = vpop.f32.mrb[0].mxu0
        %v321 = vadd.f32 0.0, %v320
        %v322 = vpop.f32.mrb[0].mxu0
        %323 = vmatprep.mubr.bf16.mxu0 0
        %324 = vmatmul.mubr.bf16.gmra.mrb[0].mxu0 %v258
        %v325 = vpop.f32.mrb[0].mxu0
        %v326 = vadd.f32 0.0, %v325
        %v327 = vpop.f32.mrb[0].mxu0
        %v328 = vpop.f32.mrb[0].mxu0
        %v329 = vadd.f32 0.0, %v328
        %v330 = vpop.f32.mrb[0].mxu0
        %331 = vmatprep.mubr.bf16.mxu0 0
        %332 = vmatmul.mubr.bf16.gmra.mrb[0].mxu0 %v261
        %v333 = vpop.f32.mrb[0].mxu0
        %v334 = vadd.f32 0.0, %v333
        %v335 = vpop.f32.mrb[0].mxu0
        %v336 = vpop.f32.mrb[0].mxu0
        %v337 = vadd.f32 0.0, %v336
        %v338 = vpop.f32.mrb[0].mxu0
        %339 = vmatprep.mubr.bf16.mxu0 0
        %340 = vmatmul.mubr.bf16.gmra.mrb[0].mxu0 %v264
        %v341 = vpop.f32.mrb[0].mxu0
        %v342 = vadd.f32 0.0, %v341
        %v343 = vpop.f32.mrb[0].mxu0
        %v344 = vpop.f32.mrb[0].mxu0
        %v345 = vadd.f32 0.0, %v344
        %v346 = vpop.f32.mrb[0].mxu0
        %347 = vmatprep.mubr.bf16.mxu0 0
        %348 = vmatmul.mubr.bf16.gmra.mrb[0].mxu0 %v267
        %v349 = vpop.f32.mrb[0].mxu0
        %v350 = vadd.f32 0.0, %v349
        %v351 = vpop.f32.mrb[0].mxu0
        %v352 = vpop.f32.mrb[0].mxu0
        %v353 = vadd.f32 0.0, %v352
        %v354 = vpop.f32.mrb[0].mxu0
        %355 = vmatprep.mubr.bf16.mxu0 0
        %356 = vmatmul.mubr.bf16.gmra.mrb[0].mxu0 %v270
        %v357 = vpop.f32.mrb[0].mxu0
        %v358 = vadd.f32 0.0, %v357
        %v359 = vpop.f32.mrb[0].mxu0
        %v360 = vpop.f32.mrb[0].mxu0
        %v361 = vadd.f32 0.0, %v360
        %v362 = vpop.f32.mrb[0].mxu0
        %363 = vmatprep.mubr.bf16.mxu0 0
        %364 = vmatmul.mubr.bf16.gmra.mrb[0].mxu0 %v273
        %v365 = vpop.f32.mrb[0].mxu0
        %v366 = vadd.f32 0.0, %v365
        %v367 = vpop.f32.mrb[0].mxu0
        %v368 = vpop.f32.mrb[0].mxu0
        %v369 = vadd.f32 0.0, %v368
        %v370 = vpop.f32.mrb[0].mxu0
        %371 = vdwg.mxu0
        %v372 = vpack.c.bf16 %v313, %v310
        %v373 = vpack.c.bf16 %v321, %v318
        %v374 = vpack.c.bf16 %v329, %v326
        %v375 = vpack.c.bf16 %v337, %v334
        %v376 = vpack.c.bf16 %v345, %v342
        %v377 = vpack.c.bf16 %v353, %v350
        %v378 = vpack.c.bf16 %v361, %v358
        %v379 = vpack.c.bf16 %v369, %v366
        %v388 = vunpack.c.l.b16 %v372
        %v389 = vunpack.c.h.b16 %v372
        %v390 = vunpack.c.l.b16 %v373
        %v391 = vunpack.c.h.b16 %v373
        %v392 = vunpack.c.l.b16 %v374
        %v393 = vunpack.c.h.b16 %v374
        %v394 = vunpack.c.l.b16 %v375
        %v395 = vunpack.c.h.b16 %v375
        %v396 = vunpack.c.l.b16 %v376
        %v397 = vunpack.c.h.b16 %v376
        %v398 = vunpack.c.l.b16 %v377
        %v399 = vunpack.c.h.b16 %v377
        %v400 = vunpack.c.l.b16 %v378
        %v401 = vunpack.c.h.b16 %v378
        %v402 = vunpack.c.l.b16 %v379
        %v403 = vunpack.c.h.b16 %v379
        %v404 = vpack.c.b16 %v388, %v388
        %v405 = vpack.c.b16 %v389, %v389
        %v406 = vpack.c.b16 %v390, %v390
        %v407 = vpack.c.b16 %v391, %v391
        %v408 = vpack.c.b16 %v392, %v392
        %v409 = vpack.c.b16 %v393, %v393
        %v410 = vpack.c.b16 %v394, %v394
        %v411 = vpack.c.b16 %v395, %v395
        %v412 = vpack.c.b16 %v396, %v396
        %v413 = vpack.c.b16 %v397, %v397
        %v414 = vpack.c.b16 %v398, %v398
        %v415 = vpack.c.b16 %v399, %v399
        %v416 = vpack.c.b16 %v400, %v400
        %v417 = vpack.c.b16 %v401, %v401
        %v418 = vpack.c.b16 %v402, %v402
        %v419 = vpack.c.b16 %v403, %v403
        %436 = vst [vmem:[%s192] sm:$0xf] %v404
        %437 = vst [vmem:[%s192 + $0x4] sm:$0xf] %v405
        %438 = vst [vmem:[%s192 + $0x8] sm:$0xf] %v406
        %439 = vst [vmem:[%s192 + $0xc] sm:$0xf] %v407
        %440 = vst [vmem:[%s192 + $0x10] sm:$0xf] %v408
        %441 = vst [vmem:[%s192 + $0x14] sm:$0xf] %v409
        %442 = vst [vmem:[%s192 + $0x18] sm:$0xf] %v410
        %443 = vst [vmem:[%s192 + $0x1c] sm:$0xf] %v411
        %444 = vst [vmem:[%s192 + $0x20] sm:$0xf] %v412
        %445 = vst [vmem:[%s192 + $0x24] sm:$0xf] %v413
        %446 = vst [vmem:[%s192 + $0x28] sm:$0xf] %v414
        %447 = vst [vmem:[%s192 + $0x2c] sm:$0xf] %v415
        %448 = vst [vmem:[%s192 + $0x30] sm:$0xf] %v416
        %449 = vst [vmem:[%s192 + $0x34] sm:$0xf] %v417
        %450 = vst [vmem:[%s192 + $0x38] sm:$0xf] %v418
        %451 = vst [vmem:[%s192 + $0x3c] sm:$0xf] %v419
        %v452 = vld [vmem:[%s2] sm:$0xff]
        %v453 = vld [vmem:[%s2 + $0x8] sm:$0xff]
        %v454 = vld [vmem:[%s2 + $0x10] sm:$0xff]
        %v455 = vld [vmem:[%s2 + $0x18] sm:$0xff]
        %v456 = vld [vmem:[%s2 + $0x20] sm:$0xff]
        %v457 = vld [vmem:[%s2 + $0x28] sm:$0xff]
        %v458 = vld [vmem:[%s2 + $0x30] sm:$0xff]
        %v459 = vld [vmem:[%s2 + $0x38] sm:$0xff]
        %v460 = vld [vmem:[%s2 + $0x40] sm:$0xff]
        %v461 = vld [vmem:[%s2 + $0x48] sm:$0xff]
        %v462 = vld [vmem:[%s2 + $0x50] sm:$0xff]
        %v463 = vld [vmem:[%s2 + $0x58] sm:$0xff]
        %v464 = vld [vmem:[%s2 + $0x60] sm:$0xff]
        %v465 = vld [vmem:[%s2 + $0x68] sm:$0xff]
        %v466 = vld [vmem:[%s2 + $0x70] sm:$0xff]
        %v467 = vld [vmem:[%s2 + $0x78] sm:$0xff]
        %468 = vmatprep.subr.mxu0 0.0
        %469 = vmatpush1.msra.mxu0 %v452
        %470 = vmatprep.subr.mxu0 0.0
        %471 = vmatpush1.msra.mxu0 %v453
        %472 = vmatprep.subr.mxu0 0.0
        %473 = vmatpush1.msra.mxu0 %v454
        %474 = vmatprep.subr.mxu0 0.0
        %475 = vmatpush1.msra.mxu0 %v455
        %476 = vmatprep.subr.mxu0 0.0
        %477 = vmatpush1.msra.mxu0 %v456
        %478 = vmatprep.subr.mxu0 0.0
        %479 = vmatpush1.msra.mxu0 %v457
        %480 = vmatprep.subr.mxu0 0.0
        %481 = vmatpush1.msra.mxu0 %v458
        %482 = vmatprep.subr.mxu0 0.0
        %483 = vmatpush1.msra.mxu0 %v459
        %484 = vmatprep.subr.mxu0 0.0
        %485 = vmatpush1.msra.mxu0 %v460
        %486 = vmatprep.subr.mxu0 0.0
        %487 = vmatpush1.msra.mxu0 %v461
        %488 = vmatprep.subr.mxu0 0.0
        %489 = vmatpush1.msra.mxu0 %v462
        %490 = vmatprep.subr.mxu0 0.0
        %491 = vmatpush1.msra.mxu0 %v463
        %492 = vmatprep.subr.mxu0 0.0
        %493 = vmatpush1.msra.mxu0 %v464
        %494 = vmatprep.subr.mxu0 0.0
        %495 = vmatpush1.msra.mxu0 %v465
        %496 = vmatprep.subr.mxu0 0.0
        %497 = vmatpush1.msra.mxu0 %v466
        %498 = vmatprep.subr.mxu0 0.0
        %499 = vmatpush1.msra.mxu0 %v467
        %500 = vmatprep.subr.mxu0 0.0
        %501 = vmatpush1.msra.mxu0 0.0
        %502 = vmatprep.subr.mxu0 0.0
        %503 = vmatpush1.msra.mxu0 0.0
        %504 = vmatprep.subr.mxu0 0.0
        %505 = vmatpush1.msra.mxu0 0.0
        %506 = vmatprep.subr.mxu0 0.0
        %507 = vmatpush1.msra.mxu0 0.0
        %508 = vmatprep.subr.mxu0 0.0
        %509 = vmatpush1.msra.mxu0 0.0
        %510 = vmatprep.subr.mxu0 0.0
        %511 = vmatpush1.msra.mxu0 0.0
        %512 = vmatprep.subr.mxu0 0.0
        %513 = vmatpush1.msra.mxu0 0.0
        %514 = vmatprep.subr.mxu0 0.0
        %515 = vmatpush1.msra.mxu0 0.0
        %516 = vmatprep.subr.mxu0 0.0
        %517 = vmatpush1.msra.mxu0 0.0
        %518 = vmatprep.subr.mxu0 0.0
        %519 = vmatpush1.msra.mxu0 0.0
        %520 = vmatprep.subr.mxu0 0.0
        %521 = vmatpush1.msra.mxu0 0.0
        %522 = vmatprep.subr.mxu0 0.0
        %523 = vmatpush1.msra.mxu0 0.0
        %524 = vmatprep.subr.mxu0 0.0
        %525 = vmatpush1.msra.mxu0 0.0
        %526 = vmatprep.subr.mxu0 0.0
        %527 = vmatpush1.msra.mxu0 0.0
        %528 = vmatprep.subr.mxu0 0.0
        %529 = vmatpush1.msra.mxu0 0.0
        %530 = vmatprep.subr.mxu0 0.0
        %531 = vmatpush1.msra.mxu0 0.0
        %532 = vmatprep.mubr.f32.mxu0 0.0
        %533 = vmatmul.mubr.f32.gmra.mrb[0].mxu0 %v310
        %v534 = vpop.f32.mrb[0].mxu0
        %v535 = vadd.f32 0.0, %v534
        %v536 = vpop.f32.mrb[0].mxu0
        %537 = vmatprep.mubr.f32.mxu0 0.0
        %538 = vmatmul.mubr.f32.gmra.mrb[0].mxu0 %v313
        %v539 = vpop.f32.mrb[0].mxu0
        %v540 = vadd.f32 0.0, %v539
        %v541 = vpop.f32.mrb[0].mxu0
        %542 = vmatprep.mubr.f32.mxu0 0.0
        %543 = vmatmul.mubr.f32.gmra.mrb[0].mxu0 %v318
        %v544 = vpop.f32.mrb[0].mxu0
        %v545 = vadd.f32 0.0, %v544
        %v546 = vpop.f32.mrb[0].mxu0
        %547 = vmatprep.mubr.f32.mxu0 0.0
        %548 = vmatmul.mubr.f32.gmra.mrb[0].mxu0 %v321
        %v549 = vpop.f32.mrb[0].mxu0
        %v550 = vadd.f32 0.0, %v549
        %v551 = vpop.f32.mrb[0].mxu0
        %552 = vmatprep.mubr.f32.mxu0 0.0
        %553 = vmatmul.mubr.f32.gmra.mrb[0].mxu0 %v326
        %v554 = vpop.f32.mrb[0].mxu0
        %v555 = vadd.f32 0.0, %v554
        %v556 = vpop.f32.mrb[0].mxu0
        %557 = vmatprep.mubr.f32.mxu0 0.0
        %558 = vmatmul.mubr.f32.gmra.mrb[0].mxu0 %v329
        %v559 = vpop.f32.mrb[0].mxu0
        %v560 = vadd.f32 0.0, %v559
        %v561 = vpop.f32.mrb[0].mxu0
        %562 = vmatprep.mubr.f32.mxu0 0.0
        %563 = vmatmul.mubr.f32.gmra.mrb[0].mxu0 %v334
        %v564 = vpop.f32.mrb[0].mxu0
        %v565 = vadd.f32 0.0, %v564
        %v566 = vpop.f32.mrb[0].mxu0
        %567 = vmatprep.mubr.f32.mxu0 0.0
        %568 = vmatmul.mubr.f32.gmra.mrb[0].mxu0 %v337
        %v569 = vpop.f32.mrb[0].mxu0
        %v570 = vadd.f32 0.0, %v569
        %v571 = vpop.f32.mrb[0].mxu0
        %572 = vmatprep.mubr.f32.mxu0 0.0
        %573 = vmatmul.mubr.f32.gmra.mrb[0].mxu0 %v342
        %v574 = vpop.f32.mrb[0].mxu0
        %v575 = vadd.f32 0.0, %v574
        %v576 = vpop.f32.mrb[0].mxu0
        %577 = vmatprep.mubr.f32.mxu0 0.0
        %578 = vmatmul.mubr.f32.gmra.mrb[0].mxu0 %v345
        %v579 = vpop.f32.mrb[0].mxu0
        %v580 = vadd.f32 0.0, %v579
        %v581 = vpop.f32.mrb[0].mxu0
        %582 = vmatprep.mubr.f32.mxu0 0.0
        %583 = vmatmul.mubr.f32.gmra.mrb[0].mxu0 %v350
        %v584 = vpop.f32.mrb[0].mxu0
        %v585 = vadd.f32 0.0, %v584
        %v586 = vpop.f32.mrb[0].mxu0
        %587 = vmatprep.mubr.f32.mxu0 0.0
        %588 = vmatmul.mubr.f32.gmra.mrb[0].mxu0 %v353
        %v589 = vpop.f32.mrb[0].mxu0
        %v590 = vadd.f32 0.0, %v589
        %v591 = vpop.f32.mrb[0].mxu0
        %592 = vmatprep.mubr.f32.mxu0 0.0
        %593 = vmatmul.mubr.f32.gmra.mrb[0].mxu0 %v358
        %v594 = vpop.f32.mrb[0].mxu0
        %v595 = vadd.f32 0.0, %v594
        %v596 = vpop.f32.mrb[0].mxu0
        %597 = vmatprep.mubr.f32.mxu0 0.0
        %598 = vmatmul.mubr.f32.gmra.mrb[0].mxu0 %v361
        %v599 = vpop.f32.mrb[0].mxu0
        %v600 = vadd.f32 0.0, %v599
        %v601 = vpop.f32.mrb[0].mxu0
        %602 = vmatprep.mubr.f32.mxu0 0.0
        %603 = vmatmul.mubr.f32.gmra.mrb[0].mxu0 %v366
        %v604 = vpop.f32.mrb[0].mxu0
        %v605 = vadd.f32 0.0, %v604
        %v606 = vpop.f32.mrb[0].mxu0
        %607 = vmatprep.mubr.f32.mxu0 0.0
        %608 = vmatmul.mubr.f32.gmra.mrb[0].mxu0 %v369
        %v609 = vpop.f32.mrb[0].mxu0
        %v610 = vadd.f32 0.0, %v609
        %v611 = vpop.f32.mrb[0].mxu0
        %612 = vdwg.mxu0
        %vm613 = vcmask 15360
        %614 = vst.msk [vmem:[%s211] sm:$0xff] %vm613, %v535
        %615 = vst.msk [vmem:[%s211 + $0x8] sm:$0xff] %vm613, %v540
        %616 = vst.msk [vmem:[%s211 + $0x10] sm:$0xff] %vm613, %v545
        %617 = vst.msk [vmem:[%s211 + $0x18] sm:$0xff] %vm613, %v550
        %618 = vst.msk [vmem:[%s211 + $0x20] sm:$0xff] %vm613, %v555
        %619 = vst.msk [vmem:[%s211 + $0x28] sm:$0xff] %vm613, %v560
        %620 = vst.msk [vmem:[%s211 + $0x30] sm:$0xff] %vm613, %v565
        %621 = vst.msk [vmem:[%s211 + $0x38] sm:$0xff] %vm613, %v570
        %622 = vst.msk [vmem:[%s211 + $0x40] sm:$0xff] %vm613, %v575
        %623 = vst.msk [vmem:[%s211 + $0x48] sm:$0xff] %vm613, %v580
        %624 = vst.msk [vmem:[%s211 + $0x50] sm:$0xff] %vm613, %v585
        %625 = vst.msk [vmem:[%s211 + $0x58] sm:$0xff] %vm613, %v590
        %626 = vst.msk [vmem:[%s211 + $0x60] sm:$0xff] %vm613, %v595
        %627 = vst.msk [vmem:[%s211 + $0x68] sm:$0xff] %vm613, %v600
        %628 = vst.msk [vmem:[%s211 + $0x70] sm:$0xff] %vm613, %v605
        %629 = vst.msk [vmem:[%s211 + $0x78] sm:$0xff] %vm613, %v610
        %s630 = sand.u32 %s95, 1
        %s631 = scalar_lea.sflag [#allocation3], %s630
        %s632 = sand.u32 %s95, 1
        %s633 = smul.addr %s632, 64
        %s634 = scalar_lea.vmem [#allocation2], %s633
        %s635 = smul.u32 16, %s19
        %p636 = scmp.lt.s32.totalorder %s635, 31
        %s637 = scalar_select %p636, %s635, 31
        %s638 = smul.addr %s637, 8
        %s639 = scalar_lea.vmem %s4, %s638
        // Predicated region
        $region33: #{tpu_custom_call.1} parent=31 // pred_check
          %p640 = pneg %p105
        $region34: #{tpu_custom_call.1} parent=31 // pred_check_branch
          %642 = sbr.rel (%p640) target = $region36
        $region35: #{tpu_custom_call.1} parent=31 // pred_region
          %s643 = smul.u32 16, %s19
          %s645 = ssub.s32 1024, 1024
          %646 = vsyncadd %s631, %s645
          %s647 = smul.addr %s643, 64
          %s648 = scalar_lea.hbm %s3, %s647
          %s649 = sshll.u32 %s634, 4
          %s650 = int_to_ptr.vmem [resolvable:$true] %s649
          %655 = dma.vmem_to_hbm [thread:$0]  %s650, 1024, %s648, %s631, 64, 64, 4
        $region36: #{tpu_custom_call.1} parent=31 // pred_fallthru
          _
        // Predicated region
        $region37: #{tpu_custom_call.1} parent=31 // pred_check
          %p656 = pneg %p131
        $region38: #{tpu_custom_call.1} parent=31 // pred_check_branch
          %658 = sbr.rel (%p656) target = $region40
        $region39: #{tpu_custom_call.1} parent=31 // pred_region
          %s659 = smul.u32 16, %s19
        $region40: #{tpu_custom_call.1} parent=31 // pred_fallthru
          _
      $region32: #{tpu_custom_call.1} parent=5 // pred_fallthru
        _
      %p660 = scmp.le.s32.totalorder 2, %s14
      // Predicated region
      $region41: #{tpu_custom_call.1} parent=5 // pred_check
        %p661 = pneg %p660
      $region42: #{tpu_custom_call.1} parent=5 // pred_check_branch
        %663 = sbr.rel (%p661) target = $region44
      $region43: #{tpu_custom_call.1} parent=5 // pred_region
        %s664 = ssub.s32 %s14, 2
        // Predicated region
        $region45: #{tpu_custom_call.1} parent=43 // pred_check
          %p665 = pneg %p111
        $region46: #{tpu_custom_call.1} parent=43 // pred_check_branch
          %667 = sbr.rel (%p665) target = $region48
        $region47: #{tpu_custom_call.1} parent=43 // pred_region
          %s668 = sand.u32 %s96, 1
          %s669 = scalar_lea.sflag [#allocation3], %s668
          %s670 = sand.u32 %s96, 1
          %s671 = smul.addr %s670, 64
          %s672 = scalar_lea.vmem [#allocation2], %s671
          %673 = dma.done %s669, 1024
        $region48: #{tpu_custom_call.1} parent=43 // pred_fallthru
          _
        // Predicated region
        $region49: #{tpu_custom_call.1} parent=43 // pred_check
          %p674 = pneg %p137
        $region50: #{tpu_custom_call.1} parent=43 // pred_check_branch
          %676 = sbr.rel (%p674) target = $region52
        $region51: #{tpu_custom_call.1} parent=43 // pred_region
          %s677 = smul.u32 16, %s20
          %p678 = scmp.lt.s32.totalorder %s677, 31
          %s679 = scalar_select %p678, %s677, 31
          %s680 = smul.addr %s679, 8
          %s681 = scalar_lea.vmem %s4, %s680
        $region52: #{tpu_custom_call.1} parent=43 // pred_fallthru
          _
      $region44: #{tpu_custom_call.1} parent=5 // pred_fallthru
        _
    $region6: #{tpu_custom_call.1} parent=1 // loop_footer
      %s18 = sadd.s32 1, %s14
    $region7: #{tpu_custom_call.1} parent=1 // loop_footer_branch
      %13 = sbr.rel target = $region3
    $region8: #{tpu_custom_call.1} parent=1 // loop_exit
      _
    %682 = vsyncpa [#allocation3], 1
    %s683 = scalar_lea.sflag [#allocation3], 1
    %684 = vsyncpa %s683, 1

</llo_original>
